<compile_context>
chip_gen: v7x
topology: tpu7x:2x2x1
jax: 0.10.0
libtpu: 0.0.40
codegen_flags: <defaults>
</compile_context>

<pallas_src>
import math

import jax
import jax.numpy as jnp
from jax.experimental import pallas as pl
from jax.experimental.pallas import tpu as pltpu

EPSILON = 1e-06


def _round_up(x: int, m: int) -> int:
    return ((x + m - 1) // m) * m


def _nutrition_loss_kernel(pred_ref, targ_ref, abs_ref, tsum_ref):
    """abs_ref / tsum_ref: (1, L) f32 accumulators, resident across axis 1."""
    @pl.when(pl.program_id(1) == 0)
    def _init():
        abs_ref[...] = jnp.zeros_like(abs_ref)
        tsum_ref[...] = jnp.zeros_like(tsum_ref)

    p = pred_ref[...].astype(jnp.float32)   # (tile_r, L)
    t = targ_ref[...].astype(jnp.float32)   # (tile_r, L)
    abs_ref[...] += jnp.sum(jnp.abs(p - t), axis=0, keepdims=True)
    tsum_ref[...] += jnp.sum(t, axis=0, keepdims=True)


def nutrition_loss(predictions: jax.Array, targets: jax.Array,
                   epsilon: float = EPSILON) -> jax.Array:
    """Pallas TPU implementation of NutritionLoss.forward.

    predictions / targets: (batch_size, num_tasks) float arrays.
    Returns a scalar float32 loss.
    """
    assert predictions.shape == targets.shape and predictions.ndim == 2
    b, t = predictions.shape

    # ---- lane packing: fold G batch rows into the lane axis ----------------
    g = 128 // math.gcd(t, 128)          # minimal fold s.t. (g*t) % 128 == 0
    lanes = g * t

    bp = _round_up(b, g)
    if bp != b:
        predictions = jnp.pad(predictions, ((0, bp - b), (0, 0)))
        targets = jnp.pad(targets, ((0, bp - b), (0, 0)))
    rows = bp // g
    pred2 = predictions.reshape(rows, lanes)
    targ2 = targets.reshape(rows, lanes)

    # ---- tile sizing: one input block <= ~2 MiB (2 in x 2 buf <= ~8 MiB) ---
    target_block_bytes = 2 * 1024 * 1024
    tile_r = max(8, (target_block_bytes // (lanes * 4)) // 8 * 8)
    tile_r = min(tile_r, 2048, _round_up(rows, 8))

    # ---- optional 2-way "parallel" split (v7x megacore) --------------------
    n_splits = 2 if _round_up(rows, tile_r) // tile_r >= 2 else 1
    rows_pad = _round_up(rows, n_splits * tile_r)
    if rows_pad != rows:
        pred2 = jnp.pad(pred2, ((0, rows_pad - rows), (0, 0)))
        targ2 = jnp.pad(targ2, ((0, rows_pad - rows), (0, 0)))
    tiles_per_split = rows_pad // (n_splits * tile_r)

    def in_map(s, i):
        return (s * tiles_per_split + i, 0)

    sum_abs, sum_t = pl.pallas_call(
        _nutrition_loss_kernel,
        out_shape=(
            jax.ShapeDtypeStruct((n_splits, 1, lanes), jnp.float32),
            jax.ShapeDtypeStruct((n_splits, 1, lanes), jnp.float32),
        ),
        grid_spec=pltpu.PrefetchScalarGridSpec(
            num_scalar_prefetch=0,
            grid=(n_splits, tiles_per_split),
            in_specs=[
                pl.BlockSpec((tile_r, lanes), in_map),
                pl.BlockSpec((tile_r, lanes), in_map),
            ],
            out_specs=[
                pl.BlockSpec((None, 1, lanes), lambda s, i: (s, 0, 0)),
                pl.BlockSpec((None, 1, lanes), lambda s, i: (s, 0, 0)),
            ],
        ),
        compiler_params=pltpu.CompilerParams(
            dimension_semantics=("parallel", "arbitrary")),
    )(pred2, targ2)

    # ---- tiny epilogue: fold splits + lane groups, one divide per task -----
    per_task_abs = sum_abs.reshape(n_splits * g, t).sum(axis=0)   # (t,)
    per_task_tgt = sum_t.reshape(n_splits * g, t).sum(axis=0)     # (t,)
    # mean|p-t| / (mean(t) + eps)  ==  sum|p-t| / (sum(t) + B*eps)   (true B)
    return jnp.mean(per_task_abs / (per_task_tgt + b * epsilon))


def _reference(predictions, targets):
    """Pure-JAX reference mirroring the PyTorch loop exactly."""
    num_tasks = predictions.shape[1]
    losses = []
    for i in range(num_tasks):
        p = predictions[:, i]
        gt = targets[:, i]
        tm = jnp.mean(gt) + EPSILON
        losses.append(jnp.mean(jnp.abs(p - gt) / tm))
    return jnp.mean(jnp.stack(losses))


if __name__ == "__main__":
    key = jax.random.PRNGKey(0)

    # Primary small test (matches the module's intended shape).
    k1, k2 = jax.random.split(key)
    batch_size, num_tasks = 8, 5
    predictions = jax.random.uniform(k1, (batch_size, num_tasks), jnp.float32,
                                     minval=0.0, maxval=10.0)
    targets = jax.random.uniform(k2, (batch_size, num_tasks), jnp.float32,
                                 minval=0.1, maxval=10.0)

    loss = nutrition_loss(predictions, targets)
    loss = jax.block_until_ready(loss)
    ref = _reference(predictions, targets)
    assert jnp.allclose(loss, ref, rtol=1e-5, atol=1e-6), (loss, ref)

    # Secondary check: batch not a multiple of the lane-packing factor
    # (exercises the zero-pad tail path).
    k3, k4 = jax.random.split(k1)
    p2 = jax.random.uniform(k3, (300, 5), jnp.float32, minval=0.0, maxval=10.0)
    t2 = jax.random.uniform(k4, (300, 5), jnp.float32, minval=0.1, maxval=10.0)
    loss2 = jax.block_until_ready(nutrition_loss(p2, t2))
    ref2 = _reference(p2, t2)
    assert jnp.allclose(loss2, ref2, rtol=1e-5, atol=1e-6), (loss2, ref2)

    print("KERNEL_OK")
</pallas_src>

<mosaic_0001>
module attributes {stable_mosaic.version = 11 : i64} {
  func.func @_nutrition_loss_kernel(%arg0: i32, %arg1: i32, %arg2: memref<8x640xf32, #tpu.memory_space<vmem>>, %arg3: memref<8x640xf32, #tpu.memory_space<vmem>>, %arg4: memref<1x1x640xf32, #tpu.memory_space<vmem>>, %arg5: memref<1x1x640xf32, #tpu.memory_space<vmem>>) attributes {dimension_semantics = [#tpu.dimension_semantics<parallel>, #tpu.dimension_semantics<arbitrary>], iteration_bounds = array<i64: 1, 1>, scalar_prefetch = 0 : i64, scratch_operands = 0 : i64, tpu.core_type = #tpu.core_type<tc>, window_params = [{transform_indices = @transform_0, window_bounds = array<i64: 8, 640>}, {transform_indices = @transform_1, window_bounds = array<i64: 8, 640>}, {transform_indices = @transform_2, window_bounds = array<i64: 1, 1, 640>}, {transform_indices = @transform_3, window_bounds = array<i64: 1, 1, 640>}]} {
    %c0_i32 = arith.constant 0 : i32
    %0 = arith.cmpi eq, %arg1, %c0_i32 : i32
    %1 = arith.extui %0 : i1 to i32
    %c0_i32_0 = arith.constant 0 : i32
    %2 = arith.cmpi ne, %1, %c0_i32_0 : i32
    scf.if %2 {
      %cst_17 = arith.constant 0.000000e+00 : f32
      %23 = vector.broadcast %cst_17 : f32 to vector<1x640xf32>
      %c0_18 = arith.constant 0 : index
      %c0_19 = arith.constant 0 : index
      %c0_20 = arith.constant 0 : index
      %24 = vector.load %arg4[%c0_18, %c0_19, %c0_20] : memref<1x1x640xf32, #tpu.memory_space<vmem>>, vector<1x1x640xf32>
      %25 = vector.shape_cast %24 : vector<1x1x640xf32> to vector<1x640xf32>
      %26 = vector.shape_cast %23 : vector<1x640xf32> to vector<1x1x640xf32>
      tpu.vector_store %arg4[%c0_18, %c0_19, %c0_20], %26 {strides = array<i32>} : memref<1x1x640xf32, #tpu.memory_space<vmem>>, vector<1x1x640xf32>,
      %cst_21 = arith.constant 0.000000e+00 : f32
      %27 = vector.broadcast %cst_21 : f32 to vector<1x640xf32>
      %c0_22 = arith.constant 0 : index
      %c0_23 = arith.constant 0 : index
      %c0_24 = arith.constant 0 : index
      %28 = vector.load %arg5[%c0_22, %c0_23, %c0_24] : memref<1x1x640xf32, #tpu.memory_space<vmem>>, vector<1x1x640xf32>
      %29 = vector.shape_cast %28 : vector<1x1x640xf32> to vector<1x640xf32>
      %30 = vector.shape_cast %27 : vector<1x640xf32> to vector<1x1x640xf32>
      tpu.vector_store %arg5[%c0_22, %c0_23, %c0_24], %30 {strides = array<i32>} : memref<1x1x640xf32, #tpu.memory_space<vmem>>, vector<1x1x640xf32>,
    } else {
    }
    %c0 = arith.constant 0 : index
    %c0_1 = arith.constant 0 : index
    %3 = vector.load %arg2[%c0, %c0_1] : memref<8x640xf32, #tpu.memory_space<vmem>>, vector<8x640xf32>
    %c0_2 = arith.constant 0 : index
    %c0_3 = arith.constant 0 : index
    %4 = vector.load %arg3[%c0_2, %c0_3] : memref<8x640xf32, #tpu.memory_space<vmem>>, vector<8x640xf32>
    %c0_4 = arith.constant 0 : index
    %c0_5 = arith.constant 0 : index
    %c0_6 = arith.constant 0 : index
    %5 = vector.load %arg4[%c0_4, %c0_5, %c0_6] : memref<1x1x640xf32, #tpu.memory_space<vmem>>, vector<1x1x640xf32>
    %6 = vector.shape_cast %5 : vector<1x1x640xf32> to vector<1x640xf32>
    %7 = arith.subf %3, %4 : vector<8x640xf32>
    %8 = math.absf %7 : vector<8x640xf32>
    %cst = arith.constant dense<0.000000e+00> : vector<640xf32>
    %9 = vector.multi_reduction <add>, %8, %cst [0] : vector<8x640xf32> to vector<640xf32>
    %10 = vector.shape_cast %9 : vector<640xf32> to vector<1x640xf32>
    %11 = arith.addf %6, %10 : vector<1x640xf32>
    %c0_7 = arith.constant 0 : index
    %c0_8 = arith.constant 0 : index
    %c0_9 = arith.constant 0 : index
    %12 = vector.load %arg4[%c0_7, %c0_8, %c0_9] : memref<1x1x640xf32, #tpu.memory_space<vmem>>, vector<1x1x640xf32>
    %13 = vector.shape_cast %12 : vector<1x1x640xf32> to vector<1x640xf32>
    %14 = vector.shape_cast %11 : vector<1x640xf32> to vector<1x1x640xf32>
    tpu.vector_store %arg4[%c0_7, %c0_8, %c0_9], %14 {strides = array<i32>} : memref<1x1x640xf32, #tpu.memory_space<vmem>>, vector<1x1x640xf32>,
    %c0_10 = arith.constant 0 : index
    %c0_11 = arith.constant 0 : index
    %c0_12 = arith.constant 0 : index
    %15 = vector.load %arg5[%c0_10, %c0_11, %c0_12] : memref<1x1x640xf32, #tpu.memory_space<vmem>>, vector<1x1x640xf32>
    %16 = vector.shape_cast %15 : vector<1x1x640xf32> to vector<1x640xf32>
    %cst_13 = arith.constant dense<0.000000e+00> : vector<640xf32>
    %17 = vector.multi_reduction <add>, %4, %cst_13 [0] : vector<8x640xf32> to vector<640xf32>
    %18 = vector.shape_cast %17 : vector<640xf32> to vector<1x640xf32>
    %19 = arith.addf %16, %18 : vector<1x640xf32>
    %c0_14 = arith.constant 0 : index
    %c0_15 = arith.constant 0 : index
    %c0_16 = arith.constant 0 : index
    %20 = vector.load %arg5[%c0_14, %c0_15, %c0_16] : memref<1x1x640xf32, #tpu.memory_space<vmem>>, vector<1x1x640xf32>
    %21 = vector.shape_cast %20 : vector<1x1x640xf32> to vector<1x640xf32>
    %22 = vector.shape_cast %19 : vector<1x640xf32> to vector<1x1x640xf32>
    tpu.vector_store %arg5[%c0_14, %c0_15, %c0_16], %22 {strides = array<i32>} : memref<1x1x640xf32, #tpu.memory_space<vmem>>, vector<1x1x640xf32>,
    return
  }
  func.func @transform_0(%arg0: i32, %arg1: i32) -> (i32, i32) {
    %c1_i32 = arith.constant 1 : i32
    %0 = arith.muli %arg0, %c1_i32 : i32
    %1 = arith.addi %0, %arg1 : i32
    %c0_i32 = arith.constant 0 : i32
    %c0_i32_0 = arith.constant 0 : i32
    return %1, %c0_i32 : i32, i32
  }
  func.func @transform_1(%arg0: i32, %arg1: i32) -> (i32, i32) {
    %c1_i32 = arith.constant 1 : i32
    %0 = arith.muli %arg0, %c1_i32 : i32
    %1 = arith.addi %0, %arg1 : i32
    %c0_i32 = arith.constant 0 : i32
    %c0_i32_0 = arith.constant 0 : i32
    return %1, %c0_i32 : i32, i32
  }
  func.func @transform_2(%arg0: i32, %arg1: i32) -> (i32, i32, i32) {
    %c0_i32 = arith.constant 0 : i32
    %c0_i32_0 = arith.constant 0 : i32
    %c0_i32_1 = arith.constant 0 : i32
    return %arg0, %c0_i32, %c0_i32_0 : i32, i32, i32
  }
  func.func @transform_3(%arg0: i32, %arg1: i32) -> (i32, i32, i32) {
    %c0_i32 = arith.constant 0 : i32
    %c0_i32_0 = arith.constant 0 : i32
    %c0_i32_1 = arith.constant 0 : i32
    return %arg0, %c0_i32, %c0_i32_0 : i32, i32, i32
  }
}

</mosaic_0001>

<llo_original>
// kernel: tpu_custom_call.1
$region0: #{tpu_custom_call.1}
  #allocation0 [shape = 'u32[]', space=smem, size = 0x4, offset = 0x4, fixed_abs, tag = 'smem constant byte address 0x4 - core index']
  #allocation1 [shape = 'u32[144,128]{1,0:T(1,128)}', space=vmem, size = 0x12000, scoped, tag = 'internal scratch']
  %s0 = inlined_call_operand.hbm [shape: f32[8,640], index: 0, kind: input, shape index: {}]
  %s1 = inlined_call_operand.hbm [shape: f32[8,640], index: 1, kind: input, shape index: {}]
  %s2 = inlined_call_operand.hbm [shape: f32[1,1,640], index: 2, kind: output, shape index: {0}]
  %s3 = inlined_call_operand.hbm [shape: f32[1,1,640], index: 3, kind: output, shape index: {1}]
  %4 = xla_tuple %s2, %s3
  %s5 = sld [smem:[#allocation0]]
  $region38: #{tpu_custom_call.1} parent=0
    _
  %s7 = ssub.s32 1, %s5
  %s8 = scalar_select 0, %s7, %s5
  $region1: #{tpu_custom_call.1} parent=0
    #allocation2 [shape = 'u8[20480]{0}', space=vmem, size = 0x5000, scoped, tag = 'input window, operand 0, single buffered']
    #allocation3 [shape = 's32[1]{0}', space=sflag, size = 0x4, scoped, tag = 'scoped memory for tpu_custom_call.1']
    #allocation4 [shape = 's32[1]{0}', space=sflag, size = 0x4, scoped, tag = 'scoped memory for tpu_custom_call.1']
    #allocation5 [shape = 'u8[20480]{0}', space=vmem, size = 0x5000, scoped, tag = 'input window, operand 1, single buffered']
    #allocation6 [shape = 's32[1]{0}', space=sflag, size = 0x4, scoped, tag = 'scoped memory for tpu_custom_call.1']
    #allocation7 [shape = 'u8[2560]{0}', space=vmem, size = 0xc00, scoped, tag = 'output window, operand 0, single buffered']
    #allocation8 [shape = 'u8[2560]{0}', space=vmem, size = 0xc00, scoped, tag = 'output window, operand 1, single buffered']
    #allocation9 [shape = 's32[1]{0}', space=sflag, size = 0x4, scoped, tag = 'scoped memory for tpu_custom_call.1']
    %9 = vsyncpa [#allocation3], 0
    %10 = vsyncpa [#allocation6], 0
    %11 = vsyncpa [#allocation4], 0
    %12 = vsyncpa [#allocation9], 0
    // Predicated region
    $region2: #{tpu_custom_call.1} parent=1 // pred_check
      _
    $region3: #{tpu_custom_call.1} parent=1 // pred_check_branch
      %14 = sbr.rel (0) target = $region5
    $region4: #{tpu_custom_call.1} parent=1 // pred_region
      %s15 = sadd.s32 0, 0
      %s17 = ssub.s32 640, 640
      %18 = vsyncadd [#allocation3], %s17
      %s19 = smul.addr %s15, 5
      %s20 = smul.addr %s19, 128
      %s21 = scalar_lea.hbm %s0, %s20
      %s23 = sshll.u32 [#allocation2], 4
      %s24 = int_to_ptr.vmem [resolvable:$true] %s23
      %26 = dma.hbm_to_vmem [thread:$0]  %s21, 640, %s24, [#allocation3]
    $region5: #{tpu_custom_call.1} parent=1 // pred_fallthru
      _
    // Predicated region
    $region6: #{tpu_custom_call.1} parent=1 // pred_check
      _
    $region7: #{tpu_custom_call.1} parent=1 // pred_check_branch
      %28 = sbr.rel (0) target = $region9
    $region8: #{tpu_custom_call.1} parent=1 // pred_region
      %s29 = sadd.s32 0, 0
      %s31 = ssub.s32 640, 640
      %32 = vsyncadd [#allocation6], %s31
      %s33 = smul.addr %s29, 5
      %s34 = smul.addr %s33, 128
      %s35 = scalar_lea.hbm %s1, %s34
      %s37 = sshll.u32 [#allocation5], 4
      %s38 = int_to_ptr.vmem [resolvable:$true] %s37
      %40 = dma.hbm_to_vmem [thread:$0]  %s35, 640, %s38, [#allocation6]
    $region9: #{tpu_custom_call.1} parent=1 // pred_fallthru
      _
    // Predicated region
    $region10: #{tpu_custom_call.1} parent=1 // pred_check
      _
    $region11: #{tpu_custom_call.1} parent=1 // pred_check_branch
      %42 = sbr.rel (0) target = $region13
    $region12: #{tpu_custom_call.1} parent=1 // pred_region
      %43 = dma.done [#allocation3], 640
    $region13: #{tpu_custom_call.1} parent=1 // pred_fallthru
      _
    // Predicated region
    $region14: #{tpu_custom_call.1} parent=1 // pred_check
      _
    $region15: #{tpu_custom_call.1} parent=1 // pred_check_branch
      %45 = sbr.rel (0) target = $region17
    $region16: #{tpu_custom_call.1} parent=1 // pred_region
      %46 = dma.done [#allocation6], 640
    $region17: #{tpu_custom_call.1} parent=1 // pred_fallthru
      _
    %s47 = sadd.s32 0, 0
    %s48 = sadd.s32 0, 0
    %p49 = scmp.eq.s32.totalorder 0, 0
    // Predicated region
    $region18: #{tpu_custom_call.1} parent=1 // pred_check
      %p50 = pneg %p49
    $region19: #{tpu_custom_call.1} parent=1 // pred_check_branch
      %52 = sbr.rel (%p50) target = $region21
    $region20: #{tpu_custom_call.1} parent=1 // pred_region
      %v53 = vlaneseq
      %vm54 = vcmp.ge.s32.totalorder %v53, 0
      %vm55 = vcmp.lt.s32.totalorder %v53, 640
      %vm56 = vmand %vm54, %vm55
      %57 = vst.msk [vmem:[#allocation7] sm:$0x1f] %vm56, 0.0
      %58 = vst.msk [vmem:[#allocation8] sm:$0x1f] %vm56, 0.0
    $region21: #{tpu_custom_call.1} parent=1 // pred_fallthru
      _
    %v59 = vld [vmem:[#allocation2] sm:$0xff]
    %v60 = vld [vmem:[#allocation2 + $0x8] sm:$0xff]
    %v61 = vld [vmem:[#allocation2 + $0x10] sm:$0xff]
    %v62 = vld [vmem:[#allocation2 + $0x18] sm:$0xff]
    %v63 = vld [vmem:[#allocation2 + $0x20] sm:$0xff]
    %v64 = vld [vmem:[#allocation5] sm:$0xff]
    %v65 = vld [vmem:[#allocation5 + $0x8] sm:$0xff]
    %v66 = vld [vmem:[#allocation5 + $0x10] sm:$0xff]
    %v67 = vld [vmem:[#allocation5 + $0x18] sm:$0xff]
    %v68 = vld [vmem:[#allocation5 + $0x20] sm:$0xff]
    %v69 = vld [vmem:[#allocation7] sm:$0x1f]
    %v70 = vsub.f32 %v59, %v64
    %v71 = vsub.f32 %v60, %v65
    %v72 = vsub.f32 %v61, %v66
    %v73 = vsub.f32 %v62, %v67
    %v74 = vsub.f32 %v63, %v68
    %v75 = vand.u32 2147483647, %v70
    %v76 = vand.u32 2147483647, %v71
    %v77 = vand.u32 2147483647, %v72
    %v78 = vand.u32 2147483647, %v73
    %v79 = vand.u32 2147483647, %v74
    %v80 = vrot.slane %v75, 4
    %v81 = vadd.f32 %v75, %v80
    %v82 = vrot.slane %v81, 2
    %v83 = vadd.f32 %v81, %v82
    %v84 = vrot.slane %v83, 1
    %v85 = vadd.f32 %v83, %v84
    %v86 = vrot.slane %v76, 4
    %v87 = vadd.f32 %v76, %v86
    %v88 = vrot.slane %v87, 2
    %v89 = vadd.f32 %v87, %v88
    %v90 = vrot.slane %v89, 1
    %v91 = vadd.f32 %v89, %v90
    %v92 = vrot.slane %v77, 4
    %v93 = vadd.f32 %v77, %v92
    %v94 = vrot.slane %v93, 2
    %v95 = vadd.f32 %v93, %v94
    %v96 = vrot.slane %v95, 1
    %v97 = vadd.f32 %v95, %v96
    %v98 = vrot.slane %v78, 4
    %v99 = vadd.f32 %v78, %v98
    %v100 = vrot.slane %v99, 2
    %v101 = vadd.f32 %v99, %v100
    %v102 = vrot.slane %v101, 1
    %v103 = vadd.f32 %v101, %v102
    %v104 = vrot.slane %v79, 4
    %v105 = vadd.f32 %v79, %v104
    %v106 = vrot.slane %v105, 2
    %v107 = vadd.f32 %v105, %v106
    %v108 = vrot.slane %v107, 1
    %v109 = vadd.f32 %v107, %v108
    %v115 = vcombine.low %v85, %v91
    %v116 = vcombine.low %v97, %v103
    %v118 = vunpack.c.l.s4 1966171168
    %v119 = vunpack.c.0.s8 %v118
    %v120 = vlaneseq
    %v121 = vshrl.u32 %v120, 7
    %v122 = vsub.s32 %v119, %v121
    %v123 = vrot.slane %v115, %v122
    %v125 = vunpack.c.l.s4 1966171168
    %v126 = vunpack.c.0.s8 %v125
    %v127 = vlaneseq
    %v128 = vshrl.u32 %v127, 7
    %v129 = vsub.s32 %v126, %v128
    %v130 = vrot.slane %v116, %v129
    %v132 = vunpack.c.l.s4 1966171168
    %v133 = vunpack.c.0.s8 %v132
    %v134 = vlaneseq
    %v135 = vshrl.u32 %v134, 7
    %v136 = vsub.s32 %v133, %v135
    %v137 = vrot.slane %v109, %v136
    %v138 = vcombine.low %v123, %v130
    %v140 = vunpack.c.l.s4 1966171168
    %v141 = vunpack.c.0.s8 %v140
    %v142 = vlaneseq
    %v143 = vshrl.u32 %v142, 7
    %v144 = vsub.s32 %v141, %v143
    %v145 = vrot.slane %v138, %v144
    %v147 = vunpack.c.l.s4 1966171168
    %v148 = vunpack.c.0.s8 %v147
    %v149 = vlaneseq
    %v150 = vshrl.u32 %v149, 7
    %v151 = vsub.s32 %v148, %v150
    %v152 = vrot.slane %v137, %v151
    %v153 = vcombine.low %v145, %v152
    %v155 = vadd.f32 %v69, %v153
    %v156 = vlaneseq
    %vm157 = vcmp.ge.s32.totalorder %v156, 0
    %vm158 = vcmp.lt.s32.totalorder %v156, 640
    %vm159 = vmand %vm157, %vm158
    %160 = vst.msk [vmem:[#allocation7] sm:$0x1f] %vm159, %v155
    %v161 = vld [vmem:[#allocation8] sm:$0x1f]
    %v162 = vrot.slane %v64, 4
    %v163 = vadd.f32 %v64, %v162
    %v164 = vrot.slane %v163, 2
    %v165 = vadd.f32 %v163, %v164
    %v166 = vrot.slane %v165, 1
    %v167 = vadd.f32 %v165, %v166
    %v168 = vrot.slane %v65, 4
    %v169 = vadd.f32 %v65, %v168
    %v170 = vrot.slane %v169, 2
    %v171 = vadd.f32 %v169, %v170
    %v172 = vrot.slane %v171, 1
    %v173 = vadd.f32 %v171, %v172
    %v174 = vrot.slane %v66, 4
    %v175 = vadd.f32 %v66, %v174
    %v176 = vrot.slane %v175, 2
    %v177 = vadd.f32 %v175, %v176
    %v178 = vrot.slane %v177, 1
    %v179 = vadd.f32 %v177, %v178
    %v180 = vrot.slane %v67, 4
    %v181 = vadd.f32 %v67, %v180
    %v182 = vrot.slane %v181, 2
    %v183 = vadd.f32 %v181, %v182
    %v184 = vrot.slane %v183, 1
    %v185 = vadd.f32 %v183, %v184
    %v186 = vrot.slane %v68, 4
    %v187 = vadd.f32 %v68, %v186
    %v188 = vrot.slane %v187, 2
    %v189 = vadd.f32 %v187, %v188
    %v190 = vrot.slane %v189, 1
    %v191 = vadd.f32 %v189, %v190
    %v197 = vcombine.low %v167, %v173
    %v198 = vcombine.low %v179, %v185
    %v200 = vunpack.c.l.s4 1966171168
    %v201 = vunpack.c.0.s8 %v200
    %v202 = vlaneseq
    %v203 = vshrl.u32 %v202, 7
    %v204 = vsub.s32 %v201, %v203
    %v205 = vrot.slane %v197, %v204
    %v207 = vunpack.c.l.s4 1966171168
    %v208 = vunpack.c.0.s8 %v207
    %v209 = vlaneseq
    %v210 = vshrl.u32 %v209, 7
    %v211 = vsub.s32 %v208, %v210
    %v212 = vrot.slane %v198, %v211
    %v214 = vunpack.c.l.s4 1966171168
    %v215 = vunpack.c.0.s8 %v214
    %v216 = vlaneseq
    %v217 = vshrl.u32 %v216, 7
    %v218 = vsub.s32 %v215, %v217
    %v219 = vrot.slane %v191, %v218
    %v220 = vcombine.low %v205, %v212
    %v222 = vunpack.c.l.s4 1966171168
    %v223 = vunpack.c.0.s8 %v222
    %v224 = vlaneseq
    %v225 = vshrl.u32 %v224, 7
    %v226 = vsub.s32 %v223, %v225
    %v227 = vrot.slane %v220, %v226
    %v229 = vunpack.c.l.s4 1966171168
    %v230 = vunpack.c.0.s8 %v229
    %v231 = vlaneseq
    %v232 = vshrl.u32 %v231, 7
    %v233 = vsub.s32 %v230, %v232
    %v234 = vrot.slane %v219, %v233
    %v235 = vcombine.low %v227, %v234
    %v237 = vadd.f32 %v161, %v235
    %238 = vst.msk [vmem:[#allocation8] sm:$0x1f] %vm159, %v237
    // Predicated region
    $region22: #{tpu_custom_call.1} parent=1 // pred_check
      _
    $region23: #{tpu_custom_call.1} parent=1 // pred_check_branch
      %240 = sbr.rel (0) target = $region25
    $region24: #{tpu_custom_call.1} parent=1 // pred_region
      %s242 = ssub.s32 80, 80
      %243 = vsyncadd [#allocation4], %s242
      %s245 = sshll.u32 [#allocation7], 4
      %s246 = int_to_ptr.vmem [resolvable:$true] %s245
      %248 = dma.vmem_to_hbm [thread:$0]  %s246, 80, %s2, [#allocation4]
    $region25: #{tpu_custom_call.1} parent=1 // pred_fallthru
      _
    // Predicated region
    $region26: #{tpu_custom_call.1} parent=1 // pred_check
      _
    $region27: #{tpu_custom_call.1} parent=1 // pred_check_branch
      %250 = sbr.rel (0) target = $region29
    $region28: #{tpu_custom_call.1} parent=1 // pred_region
      %s252 = ssub.s32 80, 80
      %253 = vsyncadd [#allocation9], %s252
      %s255 = sshll.u32 [#allocation8], 4
      %s256 = int_to_ptr.vmem [resolvable:$true] %s255
      %258 = dma.vmem_to_hbm [thread:$0]  %s256, 80, %s3, [#allocation9]
    $region29: #{tpu_custom_call.1} parent=1 // pred_fallthru
      _
    // Predicated region
    $region30: #{tpu_custom_call.1} parent=1 // pred_check
      _
    $region31: #{tpu_custom_call.1} parent=1 // pred_check_branch
      %260 = sbr.rel (0) target = $region33
    $region32: #{tpu_custom_call.1} parent=1 // pred_region
      %261 = dma.done [#allocation4], 80
    $region33: #{tpu_custom_call.1} parent=1 // pred_fallthru
      _
    // Predicated region
    $region34: #{tpu_custom_call.1} parent=1 // pred_check
      _
    $region35: #{tpu_custom_call.1} parent=1 // pred_check_branch
      %263 = sbr.rel (0) target = $region37
    $region36: #{tpu_custom_call.1} parent=1 // pred_region
      %264 = dma.done [#allocation9], 80
    $region37: #{tpu_custom_call.1} parent=1 // pred_fallthru
      _
    %265 = vsyncpa [#allocation3], 1
    %266 = vsyncpa [#allocation6], 1
    %267 = vsyncpa [#allocation4], 1
    %268 = vsyncpa [#allocation9], 1

</llo_original>
